<compile_context>
chip_gen: v5e
topology: v5e:2x2
jax: 0.10.0
libtpu: 0.0.40
codegen_flags: <defaults>
</compile_context>

<pallas_src>
import jax
import jax.numpy as jnp
from jax.experimental import pallas as pl
from jax.experimental.pallas import tpu as pltpu

# ---- small, module-consistent config (test setup only; kernel derives shapes) ----
B = 2            # batch
L = 16           # sequence length
E = 50           # embedding_dim   (as in CONFIG)
E_PAD = 64       # embedding dim zero-padded to a lane/sublane-friendly width
K = 64           # kernel_num      (as in CONFIG)
KS = (3, 4, 5)   # kernel_size     (as in CONFIG)
C = 2            # n_class         (as in CONFIG)
VOCAB = 200      # small synthetic vocab (real one is 58954)


def textcnn_kernel(emb_ref, w1_ref, b1_ref, w2_ref, b2_ref, w3_ref, b3_ref,
                   wfc_ref, bfc_ref, out_ref):
    """One grid step == one batch element.  All shapes derived from refs."""
    L_seq, E_pad = emb_ref.shape[1], emb_ref.shape[2]
    emb = emb_ref[0]                                   # (L, E_pad)  bf16
    wfc = wfc_ref[...]                                 # (sum_j K_j, C) bf16
    logits = bfc_ref[...].astype(jnp.float32)          # (1, C) f32 accumulator

    off = 0
    for w_ref, bias_ref in ((w1_ref, b1_ref), (w2_ref, b2_ref), (w3_ref, b3_ref)):
        K_out = bias_ref.shape[-1]
        k = w_ref.shape[0] // E_pad                    # kernel size (taps)
        l_out = L_seq - k + 1
        # im2col: one (l_out, k*E_pad) @ (k*E_pad, K) MXU matmul per branch.
        cols = jnp.concatenate([emb[i:i + l_out, :] for i in range(k)], axis=1)
        acc = jnp.dot(cols, w_ref[...], preferred_element_type=jnp.float32)
        acc = jnp.maximum(acc + bias_ref[...], 0.0)    # bias + ReLU (f32 epilogue)
        pooled = jnp.max(acc, axis=0, keepdims=True)   # global max-pool over time -> (1, K)
        # Accumulate FC partials instead of concatenating pooled features.
        logits = logits + jnp.dot(pooled.astype(jnp.bfloat16),
                                  wfc[off:off + K_out, :],
                                  preferred_element_type=jnp.float32)
        off += K_out

    # dropout == identity at inference; log_softmax over the class dim (f32).
    m = jnp.max(logits, axis=1, keepdims=True)
    s = logits - m
    out_ref[0] = s - jnp.log(jnp.sum(jnp.exp(s), axis=1, keepdims=True))


def textcnn_forward(token_ids, params):
    # nn.Embedding: plain-JAX table gather (parameter/glue, not the hot path).
    emb = params["embedding"][token_ids]               # (B, L, E_PAD) bf16
    Bsz, L_seq, E_pad = emb.shape
    n_class = params["bfc"].shape[-1]

    args = (emb,
            params["w1f"], params["b1"],
            params["w2f"], params["b2"],
            params["w3f"], params["b3"],
            params["wfc"], params["bfc"])

    def _resident(arr):
        nd = arr.ndim
        return pl.BlockSpec(arr.shape, lambda b: (0,) * nd)

    in_specs = ([pl.BlockSpec((1, L_seq, E_pad), lambda b: (b, 0, 0))]
                + [_resident(a) for a in args[1:]])

    out = pl.pallas_call(
        textcnn_kernel,
        out_shape=jax.ShapeDtypeStruct((Bsz, 1, n_class), jnp.float32),
        grid_spec=pltpu.PrefetchScalarGridSpec(
            num_scalar_prefetch=0,
            grid=(Bsz,),
            in_specs=in_specs,
            out_specs=pl.BlockSpec((1, 1, n_class), lambda b: (b, 0, 0)),
        ),
        compiler_params=pltpu.CompilerParams(dimension_semantics=("parallel",)),
    )(*args)
    return out[:, 0, :]                                # (B, C)


def textcnn_reference(token_ids, params):
    """Pure-JAX reference mirroring the kernel math (same bf16 params / casts)."""
    emb = params["embedding"][token_ids].astype(jnp.float32)   # (B, L, E_PAD)
    Bsz, L_seq, E_pad = emb.shape
    wfc = params["wfc"].astype(jnp.float32)
    logits = jnp.broadcast_to(params["bfc"], (Bsz, params["bfc"].shape[-1])
                              ).astype(jnp.float32)
    off = 0
    for wname, bname in (("w1f", "b1"), ("w2f", "b2"), ("w3f", "b3")):
        w = params[wname].astype(jnp.float32)                  # (k*E_PAD, K)
        bias = params[bname]
        K_out = bias.shape[-1]
        k = w.shape[0] // E_pad
        l_out = L_seq - k + 1
        cols = jnp.concatenate([emb[:, i:i + l_out, :] for i in range(k)], axis=-1)
        acc = jnp.maximum(jnp.einsum("ble,ek->blk", cols, w) + bias[None], 0.0)
        pooled = jnp.max(acc, axis=1)                          # (B, K)
        pooled = pooled.astype(jnp.bfloat16).astype(jnp.float32)
        logits = logits + pooled @ wfc[off:off + K_out, :]
        off += K_out
    return jax.nn.log_softmax(logits, axis=1)


def init_params(key):
    ks = jax.random.split(key, 10)

    def conv_w(k_rng, ksize):
        w = jax.random.normal(k_rng, (ksize, E, K), jnp.float32) * 0.1
        w = jnp.pad(w, ((0, 0), (0, E_PAD - E), (0, 0)))       # zero-pad embed dim
        # flatten tap-major / embed-minor -> matches im2col column order
        return w.reshape(ksize * E_PAD, K).astype(jnp.bfloat16)

    # pretrained word2vec is uniform(-1, 1) in the reference code
    emb_tbl = jax.random.uniform(ks[0], (VOCAB, E), jnp.float32, -1.0, 1.0)
    emb_tbl = jnp.pad(emb_tbl, ((0, 0), (0, E_PAD - E))).astype(jnp.bfloat16)

    params = {
        "embedding": emb_tbl,                                  # (VOCAB, E_PAD) bf16
        "w1f": conv_w(ks[1], KS[0]),
        "b1": jax.random.normal(ks[2], (1, K), jnp.float32) * 0.01,
        "w2f": conv_w(ks[3], KS[1]),
        "b2": jax.random.normal(ks[4], (1, K), jnp.float32) * 0.01,
        "w3f": conv_w(ks[5], KS[2]),
        "b3": jax.random.normal(ks[6], (1, K), jnp.float32) * 0.01,
        # Linear(3*K, C)
        "wfc": (jax.random.normal(ks[7], (len(KS) * K, C), jnp.float32) * 0.1
                ).astype(jnp.bfloat16),
        "bfc": jax.random.normal(ks[8], (1, C), jnp.float32) * 0.01,
    }
    return params, ks[9]


if __name__ == "__main__":
    params, data_key = init_params(jax.random.PRNGKey(0))
    token_ids = jax.random.randint(data_key, (B, L), 0, VOCAB, dtype=jnp.int32)

    out = jax.block_until_ready(textcnn_forward(token_ids, params))
    ref = textcnn_reference(token_ids, params)

    assert out.shape == (B, C) and out.dtype == jnp.float32
    # log_softmax rows must sum (in prob space) to ~1
    assert jnp.allclose(jnp.sum(jnp.exp(out), axis=1), 1.0, atol=1e-5)
    # kernel vs. pure-JAX reference (same bf16 params; diffs are accumulation order only)
    assert jnp.allclose(out, ref, atol=2e-2), (out, ref)
    print("KERNEL_OK")
</pallas_src>

<mosaic_0001>
module attributes {stable_mosaic.version = 11 : i64} {
  func.func @textcnn_kernel(%arg0: i32, %arg1: memref<1x16x64xbf16, #tpu.memory_space<vmem>>, %arg2: memref<192x64xbf16, #tpu.memory_space<vmem>>, %arg3: memref<1x64xf32, #tpu.memory_space<vmem>>, %arg4: memref<256x64xbf16, #tpu.memory_space<vmem>>, %arg5: memref<1x64xf32, #tpu.memory_space<vmem>>, %arg6: memref<320x64xbf16, #tpu.memory_space<vmem>>, %arg7: memref<1x64xf32, #tpu.memory_space<vmem>>, %arg8: memref<192x2xbf16, #tpu.memory_space<vmem>>, %arg9: memref<1x2xf32, #tpu.memory_space<vmem>>, %arg10: memref<1x1x2xf32, #tpu.memory_space<vmem>>) attributes {dimension_semantics = [#tpu.dimension_semantics<parallel>], iteration_bounds = array<i64: 2>, scalar_prefetch = 0 : i64, scratch_operands = 0 : i64, tpu.core_type = #tpu.core_type<tc>, window_params = [{transform_indices = @transform_0, window_bounds = array<i64: 1, 16, 64>}, {pipeline_mode = #tpu.pipeline_mode<synchronous>, transform_indices = @transform_1, window_bounds = array<i64: 192, 64>}, {pipeline_mode = #tpu.pipeline_mode<synchronous>, transform_indices = @transform_2, window_bounds = array<i64: 1, 64>}, {pipeline_mode = #tpu.pipeline_mode<synchronous>, transform_indices = @transform_3, window_bounds = array<i64: 256, 64>}, {pipeline_mode = #tpu.pipeline_mode<synchronous>, transform_indices = @transform_4, window_bounds = array<i64: 1, 64>}, {pipeline_mode = #tpu.pipeline_mode<synchronous>, transform_indices = @transform_5, window_bounds = array<i64: 320, 64>}, {pipeline_mode = #tpu.pipeline_mode<synchronous>, transform_indices = @transform_6, window_bounds = array<i64: 1, 64>}, {pipeline_mode = #tpu.pipeline_mode<synchronous>, transform_indices = @transform_7, window_bounds = array<i64: 192, 2>}, {pipeline_mode = #tpu.pipeline_mode<synchronous>, transform_indices = @transform_8, window_bounds = array<i64: 1, 2>}, {transform_indices = @transform_9, window_bounds = array<i64: 1, 1, 2>}]} {
    %c0 = arith.constant 0 : index
    %c0_0 = arith.constant 0 : index
    %c0_1 = arith.constant 0 : index
    %0 = vector.load %arg1[%c0, %c0_0, %c0_1] : memref<1x16x64xbf16, #tpu.memory_space<vmem>>, vector<1x16x64xbf16>
    %1 = vector.shape_cast %0 : vector<1x16x64xbf16> to vector<16x64xbf16>
    %c0_2 = arith.constant 0 : index
    %c0_3 = arith.constant 0 : index
    %2 = vector.load %arg8[%c0_2, %c0_3] : memref<192x2xbf16, #tpu.memory_space<vmem>>, vector<192x2xbf16>
    %c0_4 = arith.constant 0 : index
    %c0_5 = arith.constant 0 : index
    %3 = vector.load %arg9[%c0_4, %c0_5] : memref<1x2xf32, #tpu.memory_space<vmem>>, vector<1x2xf32>
    %4 = vector.extract_strided_slice %1 {offsets = [0, 0], sizes = [14, 64], strides = [1, 1]} : vector<16x64xbf16> to vector<14x64xbf16>
    %5 = vector.extract_strided_slice %1 {offsets = [1, 0], sizes = [14, 64], strides = [1, 1]} : vector<16x64xbf16> to vector<14x64xbf16>
    %6 = vector.extract_strided_slice %1 {offsets = [2, 0], sizes = [14, 64], strides = [1, 1]} : vector<16x64xbf16> to vector<14x64xbf16>
    %7 = tpu.concatenate %4, %5, %6 in 1 : vector<14x64xbf16>, vector<14x64xbf16>, vector<14x64xbf16> -> vector<14x192xbf16>
    %c0_6 = arith.constant 0 : index
    %c0_7 = arith.constant 0 : index
    %8 = vector.load %arg2[%c0_6, %c0_7] : memref<192x64xbf16, #tpu.memory_space<vmem>>, vector<192x64xbf16>
    %cst = arith.constant dense<0.000000e+00> : vector<14x64xf32>
    %9 = tpu.matmul %7, %8, %cst {dimension_numbers = #tpu.dot_dimension_numbers<[1], [0], [0], [1], [0, 0, 1, 1], [], []>} : vector<14x192xbf16>, vector<192x64xbf16>, vector<14x64xf32> -> vector<14x64xf32>
    %c0_8 = arith.constant 0 : index
    %c0_9 = arith.constant 0 : index
    %10 = vector.load %arg3[%c0_8, %c0_9] : memref<1x64xf32, #tpu.memory_space<vmem>>, vector<1x64xf32>
    %11 = vector.broadcast %10 : vector<1x64xf32> to vector<14x64xf32>
    %12 = arith.addf %9, %11 : vector<14x64xf32>
    %cst_10 = arith.constant 0.000000e+00 : f32
    %13 = vector.broadcast %cst_10 : f32 to vector<14x64xf32>
    %14 = arith.maximumf %12, %13 : vector<14x64xf32>
    %cst_11 = arith.constant dense<0xFF800000> : vector<64xf32>
    %15 = vector.multi_reduction <maximumf>, %14, %cst_11 [0] : vector<14x64xf32> to vector<64xf32>
    %16 = vector.shape_cast %15 : vector<64xf32> to vector<1x64xf32>
    %17 = arith.truncf %16 : vector<1x64xf32> to vector<1x64xbf16>
    %18 = vector.extract_strided_slice %2 {offsets = [0, 0], sizes = [64, 2], strides = [1, 1]} : vector<192x2xbf16> to vector<64x2xbf16>
    %cst_12 = arith.constant dense<0.000000e+00> : vector<1x2xf32>
    %19 = tpu.matmul %17, %18, %cst_12 {dimension_numbers = #tpu.dot_dimension_numbers<[1], [0], [0], [1], [0, 0, 1, 1], [], []>} : vector<1x64xbf16>, vector<64x2xbf16>, vector<1x2xf32> -> vector<1x2xf32>
    %20 = arith.addf %3, %19 : vector<1x2xf32>
    %21 = vector.extract_strided_slice %1 {offsets = [0, 0], sizes = [13, 64], strides = [1, 1]} : vector<16x64xbf16> to vector<13x64xbf16>
    %22 = vector.extract_strided_slice %1 {offsets = [1, 0], sizes = [13, 64], strides = [1, 1]} : vector<16x64xbf16> to vector<13x64xbf16>
    %23 = vector.extract_strided_slice %1 {offsets = [2, 0], sizes = [13, 64], strides = [1, 1]} : vector<16x64xbf16> to vector<13x64xbf16>
    %24 = vector.extract_strided_slice %1 {offsets = [3, 0], sizes = [13, 64], strides = [1, 1]} : vector<16x64xbf16> to vector<13x64xbf16>
    %25 = tpu.concatenate %21, %22, %23, %24 in 1 : vector<13x64xbf16>, vector<13x64xbf16>, vector<13x64xbf16>, vector<13x64xbf16> -> vector<13x256xbf16>
    %c0_13 = arith.constant 0 : index
    %c0_14 = arith.constant 0 : index
    %26 = vector.load %arg4[%c0_13, %c0_14] : memref<256x64xbf16, #tpu.memory_space<vmem>>, vector<256x64xbf16>
    %cst_15 = arith.constant dense<0.000000e+00> : vector<13x64xf32>
    %27 = tpu.matmul %25, %26, %cst_15 {dimension_numbers = #tpu.dot_dimension_numbers<[1], [0], [0], [1], [0, 0, 1, 1], [], []>} : vector<13x256xbf16>, vector<256x64xbf16>, vector<13x64xf32> -> vector<13x64xf32>
    %c0_16 = arith.constant 0 : index
    %c0_17 = arith.constant 0 : index
    %28 = vector.load %arg5[%c0_16, %c0_17] : memref<1x64xf32, #tpu.memory_space<vmem>>, vector<1x64xf32>
    %29 = vector.broadcast %28 : vector<1x64xf32> to vector<13x64xf32>
    %30 = arith.addf %27, %29 : vector<13x64xf32>
    %cst_18 = arith.constant 0.000000e+00 : f32
    %31 = vector.broadcast %cst_18 : f32 to vector<13x64xf32>
    %32 = arith.maximumf %30, %31 : vector<13x64xf32>
    %cst_19 = arith.constant dense<0xFF800000> : vector<64xf32>
    %33 = vector.multi_reduction <maximumf>, %32, %cst_19 [0] : vector<13x64xf32> to vector<64xf32>
    %34 = vector.shape_cast %33 : vector<64xf32> to vector<1x64xf32>
    %35 = arith.truncf %34 : vector<1x64xf32> to vector<1x64xbf16>
    %36 = vector.extract_strided_slice %2 {offsets = [64, 0], sizes = [64, 2], strides = [1, 1]} : vector<192x2xbf16> to vector<64x2xbf16>
    %cst_20 = arith.constant dense<0.000000e+00> : vector<1x2xf32>
    %37 = tpu.matmul %35, %36, %cst_20 {dimension_numbers = #tpu.dot_dimension_numbers<[1], [0], [0], [1], [0, 0, 1, 1], [], []>} : vector<1x64xbf16>, vector<64x2xbf16>, vector<1x2xf32> -> vector<1x2xf32>
    %38 = arith.addf %20, %37 : vector<1x2xf32>
    %39 = vector.extract_strided_slice %1 {offsets = [0, 0], sizes = [12, 64], strides = [1, 1]} : vector<16x64xbf16> to vector<12x64xbf16>
    %40 = vector.extract_strided_slice %1 {offsets = [1, 0], sizes = [12, 64], strides = [1, 1]} : vector<16x64xbf16> to vector<12x64xbf16>
    %41 = vector.extract_strided_slice %1 {offsets = [2, 0], sizes = [12, 64], strides = [1, 1]} : vector<16x64xbf16> to vector<12x64xbf16>
    %42 = vector.extract_strided_slice %1 {offsets = [3, 0], sizes = [12, 64], strides = [1, 1]} : vector<16x64xbf16> to vector<12x64xbf16>
    %43 = vector.extract_strided_slice %1 {offsets = [4, 0], sizes = [12, 64], strides = [1, 1]} : vector<16x64xbf16> to vector<12x64xbf16>
    %44 = tpu.concatenate %39, %40, %41, %42, %43 in 1 : vector<12x64xbf16>, vector<12x64xbf16>, vector<12x64xbf16>, vector<12x64xbf16>, vector<12x64xbf16> -> vector<12x320xbf16>
    %c0_21 = arith.constant 0 : index
    %c0_22 = arith.constant 0 : index
    %45 = vector.load %arg6[%c0_21, %c0_22] : memref<320x64xbf16, #tpu.memory_space<vmem>>, vector<320x64xbf16>
    %cst_23 = arith.constant dense<0.000000e+00> : vector<12x64xf32>
    %46 = tpu.matmul %44, %45, %cst_23 {dimension_numbers = #tpu.dot_dimension_numbers<[1], [0], [0], [1], [0, 0, 1, 1], [], []>} : vector<12x320xbf16>, vector<320x64xbf16>, vector<12x64xf32> -> vector<12x64xf32>
    %c0_24 = arith.constant 0 : index
    %c0_25 = arith.constant 0 : index
    %47 = vector.load %arg7[%c0_24, %c0_25] : memref<1x64xf32, #tpu.memory_space<vmem>>, vector<1x64xf32>
    %48 = vector.broadcast %47 : vector<1x64xf32> to vector<12x64xf32>
    %49 = arith.addf %46, %48 : vector<12x64xf32>
    %cst_26 = arith.constant 0.000000e+00 : f32
    %50 = vector.broadcast %cst_26 : f32 to vector<12x64xf32>
    %51 = arith.maximumf %49, %50 : vector<12x64xf32>
    %cst_27 = arith.constant dense<0xFF800000> : vector<64xf32>
    %52 = vector.multi_reduction <maximumf>, %51, %cst_27 [0] : vector<12x64xf32> to vector<64xf32>
    %53 = vector.shape_cast %52 : vector<64xf32> to vector<1x64xf32>
    %54 = arith.truncf %53 : vector<1x64xf32> to vector<1x64xbf16>
    %55 = vector.extract_strided_slice %2 {offsets = [128, 0], sizes = [64, 2], strides = [1, 1]} : vector<192x2xbf16> to vector<64x2xbf16>
    %cst_28 = arith.constant dense<0.000000e+00> : vector<1x2xf32>
    %56 = tpu.matmul %54, %55, %cst_28 {dimension_numbers = #tpu.dot_dimension_numbers<[1], [0], [0], [1], [0, 0, 1, 1], [], []>} : vector<1x64xbf16>, vector<64x2xbf16>, vector<1x2xf32> -> vector<1x2xf32>
    %57 = arith.addf %38, %56 : vector<1x2xf32>
    %cst_29 = arith.constant dense<0xFF800000> : vector<1xf32>
    %58 = vector.multi_reduction <maximumf>, %57, %cst_29 [1] : vector<1x2xf32> to vector<1xf32>
    %59 = vector.shape_cast %58 : vector<1xf32> to vector<1x1xf32>
    %60 = vector.broadcast %59 : vector<1x1xf32> to vector<1x2xf32>
    %61 = arith.subf %57, %60 : vector<1x2xf32>
    %62 = math.exp %61 : vector<1x2xf32>
    %cst_30 = arith.constant dense<0.000000e+00> : vector<1xf32>
    %63 = vector.multi_reduction <add>, %62, %cst_30 [1] : vector<1x2xf32> to vector<1xf32>
    %64 = vector.shape_cast %63 : vector<1xf32> to vector<1x1xf32>
    %65 = math.log %64 : vector<1x1xf32>
    %66 = vector.broadcast %65 : vector<1x1xf32> to vector<1x2xf32>
    %67 = arith.subf %61, %66 : vector<1x2xf32>
    %c0_31 = arith.constant 0 : index
    %c0_32 = arith.constant 0 : index
    %c0_33 = arith.constant 0 : index
    %68 = vector.load %arg10[%c0_31, %c0_32, %c0_33] : memref<1x1x2xf32, #tpu.memory_space<vmem>>, vector<1x1x2xf32>
    %69 = vector.shape_cast %68 : vector<1x1x2xf32> to vector<1x2xf32>
    %70 = vector.shape_cast %67 : vector<1x2xf32> to vector<1x1x2xf32>
    tpu.vector_store %arg10[%c0_31, %c0_32, %c0_33], %70 {strides = array<i32>} : memref<1x1x2xf32, #tpu.memory_space<vmem>>, vector<1x1x2xf32>,
    return
  }
  func.func @transform_0(%arg0: i32) -> (i32, i32, i32) {
    %c0_i32 = arith.constant 0 : i32
    %c0_i32_0 = arith.constant 0 : i32
    %c0_i32_1 = arith.constant 0 : i32
    return %arg0, %c0_i32, %c0_i32_0 : i32, i32, i32
  }
  func.func @transform_1(%arg0: i32) -> (i32, i32) {
    %c0_i32 = arith.constant 0 : i32
    %c0_i32_0 = arith.constant 0 : i32
    %c0_i32_1 = arith.constant 0 : i32
    return %c0_i32, %c0_i32_0 : i32, i32
  }
  func.func @transform_2(%arg0: i32) -> (i32, i32) {
    %c0_i32 = arith.constant 0 : i32
    %c0_i32_0 = arith.constant 0 : i32
    %c0_i32_1 = arith.constant 0 : i32
    return %c0_i32, %c0_i32_0 : i32, i32
  }
  func.func @transform_3(%arg0: i32) -> (i32, i32) {
    %c0_i32 = arith.constant 0 : i32
    %c0_i32_0 = arith.constant 0 : i32
    %c0_i32_1 = arith.constant 0 : i32
    return %c0_i32, %c0_i32_0 : i32, i32
  }
  func.func @transform_4(%arg0: i32) -> (i32, i32) {
    %c0_i32 = arith.constant 0 : i32
    %c0_i32_0 = arith.constant 0 : i32
    %c0_i32_1 = arith.constant 0 : i32
    return %c0_i32, %c0_i32_0 : i32, i32
  }
  func.func @transform_5(%arg0: i32) -> (i32, i32) {
    %c0_i32 = arith.constant 0 : i32
    %c0_i32_0 = arith.constant 0 : i32
    %c0_i32_1 = arith.constant 0 : i32
    return %c0_i32, %c0_i32_0 : i32, i32
  }
  func.func @transform_6(%arg0: i32) -> (i32, i32) {
    %c0_i32 = arith.constant 0 : i32
    %c0_i32_0 = arith.constant 0 : i32
    %c0_i32_1 = arith.constant 0 : i32
    return %c0_i32, %c0_i32_0 : i32, i32
  }
  func.func @transform_7(%arg0: i32) -> (i32, i32) {
    %c0_i32 = arith.constant 0 : i32
    %c0_i32_0 = arith.constant 0 : i32
    %c0_i32_1 = arith.constant 0 : i32
    return %c0_i32, %c0_i32_0 : i32, i32
  }
  func.func @transform_8(%arg0: i32) -> (i32, i32) {
    %c0_i32 = arith.constant 0 : i32
    %c0_i32_0 = arith.constant 0 : i32
    %c0_i32_1 = arith.constant 0 : i32
    return %c0_i32, %c0_i32_0 : i32, i32
  }
  func.func @transform_9(%arg0: i32) -> (i32, i32, i32) {
    %c0_i32 = arith.constant 0 : i32
    %c0_i32_0 = arith.constant 0 : i32
    %c0_i32_1 = arith.constant 0 : i32
    return %arg0, %c0_i32, %c0_i32_0 : i32, i32, i32
  }
}

</mosaic_0001>

<llo_original>
// kernel: tpu_custom_call.1
$region0: #{tpu_custom_call.1}
  #allocation0 [shape = 'u32[]', space=smem, size = 0x4, offset = 0x4, fixed_abs, tag = 'smem constant byte address 0x4 - core index']
  #allocation1 [shape = 'u32[72,128]{1,0:T(1,128)}', space=vmem, size = 0x9000, scoped, tag = 'internal scratch']
  %s0 = inlined_call_operand.vmem [shape: bf16[2,16,64], index: 0, kind: input, shape index: {}]
  %s1 = inlined_call_operand.vmem [shape: bf16[192,64], index: 1, kind: input, shape index: {}]
  %s2 = inlined_call_operand.vmem [shape: f32[1,64], index: 2, kind: input, shape index: {}]
  %s3 = inlined_call_operand.vmem [shape: bf16[256,64], index: 3, kind: input, shape index: {}]
  %s4 = inlined_call_operand.vmem [shape: f32[1,64], index: 4, kind: input, shape index: {}]
  %s5 = inlined_call_operand.vmem [shape: bf16[320,64], index: 5, kind: input, shape index: {}]
  %s6 = inlined_call_operand.vmem [shape: f32[1,64], index: 6, kind: input, shape index: {}]
  %s7 = inlined_call_operand.vmem [shape: bf16[192,2], index: 7, kind: input, shape index: {}]
  %s8 = inlined_call_operand.vmem [shape: f32[1,2], index: 8, kind: input, shape index: {}]
  %s9 = inlined_call_operand.hbm [shape: f32[2,1,2], index: 9, kind: output, shape index: {}]
  %s10 = sld [smem:[#allocation0]]
  $region69: #{tpu_custom_call.1} parent=0
    _
  %s12 = ssub.s32 1, %s10
  %s13 = scalar_select 0, %s12, %s10
  $region1: #{tpu_custom_call.1} parent=0
    #allocation2 [shape = 'u8[1024]{0}', space=vmem, size = 0x400, scoped, tag = 'output window, operand 0']
    #allocation3 [shape = 's32[2]{0}', space=sflag, size = 0x8, scoped, tag = 'scoped memory for tpu_custom_call.1']
    %14 = vsyncpa [#allocation3], 0
    %s15 = scalar_lea.sflag [#allocation3], 1
    %16 = vsyncpa %s15, 0
    loop: start=0, step=1, limit=4
    $region2: #{tpu_custom_call.1} parent=1 // loop_pre_header
      _
    $region3: #{tpu_custom_call.1} parent=1 // loop_header
      %s18 = sphi 0, %s22
      %p19 = scmp.ge.s32.totalorder %s18, 4
      %s28 = sphi 0, %s30
      %s31 = sphi 0, %s28
      %s32 = sphi 0, %s31
      %s48 = sphi 0, %s32
      %s52 = sphi 0, %s52
      %s54 = sphi 0, %s52
      %s55 = sphi 0, %s54
      %s69 = sphi 0, %s55
      %s73 = sphi 0, %s73
      %s75 = sphi 0, %s73
      %s76 = sphi 0, %s75
      %s90 = sphi 0, %s76
      %s94 = sphi 0, %s94
      %s96 = sphi 0, %s94
      %s97 = sphi 0, %s96
      %s111 = sphi 0, %s97
      %s115 = sphi 0, %s115
      %s117 = sphi 0, %s115
      %s118 = sphi 0, %s117
      %s132 = sphi 0, %s118
      %s136 = sphi 0, %s136
      %s138 = sphi 0, %s136
      %s139 = sphi 0, %s138
      %s153 = sphi 0, %s139
      %s157 = sphi 0, %s157
      %s159 = sphi 0, %s157
      %s160 = sphi 0, %s159
      %s174 = sphi 0, %s160
      %s178 = sphi 0, %s178
      %s180 = sphi 0, %s178
      %s181 = sphi 0, %s180
      %s195 = sphi 0, %s181
      %s199 = sphi 0, %s199
      %s201 = sphi 0, %s199
      %s202 = sphi 0, %s201
      %s216 = sphi 0, %s202
      %s222 = sphi 0, %s224
      %s225 = sphi 0, %s222
      %s226 = sphi 0, %s225
      %s242 = sphi 0, %s226
    $region4: #{tpu_custom_call.1} parent=1 // loop_header_branch
      %21 = sbr.rel (%p19) target = $region8
    $region5: #{tpu_custom_call.1} parent=1 // loop_body
      %s23 = ssub.s32 %s18, 1
      %s24 = ssub.s32 %s18, 2
      %s25 = sadd.s32 %s18, 1
      %s26 = ssub.s32 %s18, %s25
      %p27 = scmp.eq.s32.totalorder %s26, 0
      %s29 = sadd.s32 %s28, 1
      %s30 = scalar_select %p27, %s28, %s29
      %p33 = pneg %p27
      %p34 = scmp.eq.s32.totalorder %s18, 1
      %p35 = por %p33, %p34
      %p36 = scmp.ne.s32.totalorder %s28, %s31
      %p37 = scmp.eq.s32.totalorder %s18, 0
      %p38 = por %p36, %p37
      %p39 = scmp.ne.s32.totalorder %s28, %s31
      %p40 = scmp.eq.s32.totalorder %s23, 1
      %p41 = por %p39, %p40
      %p42 = scmp.ne.s32.totalorder %s31, %s32
      %p43 = scmp.eq.s32.totalorder %s23, 0
      %p44 = por %p42, %p43
      %p45 = scmp.ne.s32.totalorder %s31, %s32
      %p46 = scmp.eq.s32.totalorder %s24, 1
      %p47 = por %p45, %p46
      %p49 = scmp.ne.s32.totalorder %s32, %s48
      %p50 = scmp.eq.s32.totalorder %s24, 0
      %p51 = por %p49, %p50
      %s53 = sadd.s32 %s52, 1
      %p56 = scmp.eq.s32.totalorder %s18, 1
      %p57 = scmp.ne.s32.totalorder %s52, %s54
      %p58 = scmp.eq.s32.totalorder %s18, 0
      %p59 = por %p57, %p58
      %p60 = scmp.ne.s32.totalorder %s52, %s54
      %p61 = scmp.eq.s32.totalorder %s23, 1
      %p62 = por %p60, %p61
      %p63 = scmp.ne.s32.totalorder %s54, %s55
      %p64 = scmp.eq.s32.totalorder %s23, 0
      %p65 = por %p63, %p64
      %p66 = scmp.ne.s32.totalorder %s54, %s55
      %p67 = scmp.eq.s32.totalorder %s24, 1
      %p68 = por %p66, %p67
      %p70 = scmp.ne.s32.totalorder %s55, %s69
      %p71 = scmp.eq.s32.totalorder %s24, 0
      %p72 = por %p70, %p71
      %s74 = sadd.s32 %s73, 1
      %p77 = scmp.eq.s32.totalorder %s18, 1
      %p78 = scmp.ne.s32.totalorder %s73, %s75
      %p79 = scmp.eq.s32.totalorder %s18, 0
      %p80 = por %p78, %p79
      %p81 = scmp.ne.s32.totalorder %s73, %s75
      %p82 = scmp.eq.s32.totalorder %s23, 1
      %p83 = por %p81, %p82
      %p84 = scmp.ne.s32.totalorder %s75, %s76
      %p85 = scmp.eq.s32.totalorder %s23, 0
      %p86 = por %p84, %p85
      %p87 = scmp.ne.s32.totalorder %s75, %s76
      %p88 = scmp.eq.s32.totalorder %s24, 1
      %p89 = por %p87, %p88
      %p91 = scmp.ne.s32.totalorder %s76, %s90
      %p92 = scmp.eq.s32.totalorder %s24, 0
      %p93 = por %p91, %p92
      %s95 = sadd.s32 %s94, 1
      %p98 = scmp.eq.s32.totalorder %s18, 1
      %p99 = scmp.ne.s32.totalorder %s94, %s96
      %p100 = scmp.eq.s32.totalorder %s18, 0
      %p101 = por %p99, %p100
      %p102 = scmp.ne.s32.totalorder %s94, %s96
      %p103 = scmp.eq.s32.totalorder %s23, 1
      %p104 = por %p102, %p103
      %p105 = scmp.ne.s32.totalorder %s96, %s97
      %p106 = scmp.eq.s32.totalorder %s23, 0
      %p107 = por %p105, %p106
      %p108 = scmp.ne.s32.totalorder %s96, %s97
      %p109 = scmp.eq.s32.totalorder %s24, 1
      %p110 = por %p108, %p109
      %p112 = scmp.ne.s32.totalorder %s97, %s111
      %p113 = scmp.eq.s32.totalorder %s24, 0
      %p114 = por %p112, %p113
      %s116 = sadd.s32 %s115, 1
      %p119 = scmp.eq.s32.totalorder %s18, 1
      %p120 = scmp.ne.s32.totalorder %s115, %s117
      %p121 = scmp.eq.s32.totalorder %s18, 0
      %p122 = por %p120, %p121
      %p123 = scmp.ne.s32.totalorder %s115, %s117
      %p124 = scmp.eq.s32.totalorder %s23, 1
      %p125 = por %p123, %p124
      %p126 = scmp.ne.s32.totalorder %s117, %s118
      %p127 = scmp.eq.s32.totalorder %s23, 0
      %p128 = por %p126, %p127
      %p129 = scmp.ne.s32.totalorder %s117, %s118
      %p130 = scmp.eq.s32.totalorder %s24, 1
      %p131 = por %p129, %p130
      %p133 = scmp.ne.s32.totalorder %s118, %s132
      %p134 = scmp.eq.s32.totalorder %s24, 0
      %p135 = por %p133, %p134
      %s137 = sadd.s32 %s136, 1
      %p140 = scmp.eq.s32.totalorder %s18, 1
      %p141 = scmp.ne.s32.totalorder %s136, %s138
      %p142 = scmp.eq.s32.totalorder %s18, 0
      %p143 = por %p141, %p142
      %p144 = scmp.ne.s32.totalorder %s136, %s138
      %p145 = scmp.eq.s32.totalorder %s23, 1
      %p146 = por %p144, %p145
      %p147 = scmp.ne.s32.totalorder %s138, %s139
      %p148 = scmp.eq.s32.totalorder %s23, 0
      %p149 = por %p147, %p148
      %p150 = scmp.ne.s32.totalorder %s138, %s139
      %p151 = scmp.eq.s32.totalorder %s24, 1
      %p152 = por %p150, %p151
      %p154 = scmp.ne.s32.totalorder %s139, %s153
      %p155 = scmp.eq.s32.totalorder %s24, 0
      %p156 = por %p154, %p155
      %s158 = sadd.s32 %s157, 1
      %p161 = scmp.eq.s32.totalorder %s18, 1
      %p162 = scmp.ne.s32.totalorder %s157, %s159
      %p163 = scmp.eq.s32.totalorder %s18, 0
      %p164 = por %p162, %p163
      %p165 = scmp.ne.s32.totalorder %s157, %s159
      %p166 = scmp.eq.s32.totalorder %s23, 1
      %p167 = por %p165, %p166
      %p168 = scmp.ne.s32.totalorder %s159, %s160
      %p169 = scmp.eq.s32.totalorder %s23, 0
      %p170 = por %p168, %p169
      %p171 = scmp.ne.s32.totalorder %s159, %s160
      %p172 = scmp.eq.s32.totalorder %s24, 1
      %p173 = por %p171, %p172
      %p175 = scmp.ne.s32.totalorder %s160, %s174
      %p176 = scmp.eq.s32.totalorder %s24, 0
      %p177 = por %p175, %p176
      %s179 = sadd.s32 %s178, 1
      %p182 = scmp.eq.s32.totalorder %s18, 1
      %p183 = scmp.ne.s32.totalorder %s178, %s180
      %p184 = scmp.eq.s32.totalorder %s18, 0
      %p185 = por %p183, %p184
      %p186 = scmp.ne.s32.totalorder %s178, %s180
      %p187 = scmp.eq.s32.totalorder %s23, 1
      %p188 = por %p186, %p187
      %p189 = scmp.ne.s32.totalorder %s180, %s181
      %p190 = scmp.eq.s32.totalorder %s23, 0
      %p191 = por %p189, %p190
      %p192 = scmp.ne.s32.totalorder %s180, %s181
      %p193 = scmp.eq.s32.totalorder %s24, 1
      %p194 = por %p192, %p193
      %p196 = scmp.ne.s32.totalorder %s181, %s195
      %p197 = scmp.eq.s32.totalorder %s24, 0
      %p198 = por %p196, %p197
      %s200 = sadd.s32 %s199, 1
      %p203 = scmp.eq.s32.totalorder %s18, 1
      %p204 = scmp.ne.s32.totalorder %s199, %s201
      %p205 = scmp.eq.s32.totalorder %s18, 0
      %p206 = por %p204, %p205
      %p207 = scmp.ne.s32.totalorder %s199, %s201
      %p208 = scmp.eq.s32.totalorder %s23, 1
      %p209 = por %p207, %p208
      %p210 = scmp.ne.s32.totalorder %s201, %s202
      %p211 = scmp.eq.s32.totalorder %s23, 0
      %p212 = por %p210, %p211
      %p213 = scmp.ne.s32.totalorder %s201, %s202
      %p214 = scmp.eq.s32.totalorder %s24, 1
      %p215 = por %p213, %p214
      %p217 = scmp.ne.s32.totalorder %s202, %s216
      %p218 = scmp.eq.s32.totalorder %s24, 0
      %p219 = por %p217, %p218
      %s220 = ssub.s32 %s18, %s25
      %p221 = scmp.eq.s32.totalorder %s220, 0
      %s223 = sadd.s32 %s222, 1
      %s224 = scalar_select %p221, %s222, %s223
      %p227 = pneg %p221
      %p228 = scmp.eq.s32.totalorder %s18, 1
      %p229 = por %p227, %p228
      %p230 = scmp.ne.s32.totalorder %s222, %s225
      %p231 = scmp.eq.s32.totalorder %s18, 0
      %p232 = por %p230, %p231
      %p233 = scmp.ne.s32.totalorder %s222, %s225
      %p234 = scmp.eq.s32.totalorder %s23, 1
      %p235 = por %p233, %p234
      %p236 = scmp.ne.s32.totalorder %s225, %s226
      %p237 = scmp.eq.s32.totalorder %s23, 0
      %p238 = por %p236, %p237
      %p239 = scmp.ne.s32.totalorder %s225, %s226
      %p240 = scmp.eq.s32.totalorder %s24, 1
      %p241 = por %p239, %p240
      %p243 = scmp.ne.s32.totalorder %s226, %s242
      %p244 = scmp.eq.s32.totalorder %s24, 0
      %p245 = por %p243, %p244
      %p246 = scmp.le.s32.totalorder 1, %s18
      %p247 = scmp.lt.s32.totalorder %s18, 3
      %p248 = pnand %p246, %p247
      %p249 = pneg %p248
      // Predicated region
      $region9: #{tpu_custom_call.1} parent=5 // pred_check
        _
      $region10: #{tpu_custom_call.1} parent=5 // pred_check_branch
        %251 = sbr.rel (%p248) target = $region12
      $region11: #{tpu_custom_call.1} parent=5 // pred_region
        %s252 = ssub.s32 %s18, 1
        // Predicated region
        $region13: #{tpu_custom_call.1} parent=11 // pred_check
          %p253 = pneg %p65
        $region14: #{tpu_custom_call.1} parent=11 // pred_check_branch
          %255 = sbr.rel (%p253) target = $region16
        $region15: #{tpu_custom_call.1} parent=11 // pred_region
          _
        $region16: #{tpu_custom_call.1} parent=11 // pred_fallthru
          _
        // Predicated region
        $region17: #{tpu_custom_call.1} parent=11 // pred_check
          %p256 = pneg %p86
        $region18: #{tpu_custom_call.1} parent=11 // pred_check_branch
          %258 = sbr.rel (%p256) target = $region20
        $region19: #{tpu_custom_call.1} parent=11 // pred_region
          _
        $region20: #{tpu_custom_call.1} parent=11 // pred_fallthru
          _
        // Predicated region
        $region21: #{tpu_custom_call.1} parent=11 // pred_check
          %p259 = pneg %p107
        $region22: #{tpu_custom_call.1} parent=11 // pred_check_branch
          %261 = sbr.rel (%p259) target = $region24
        $region23: #{tpu_custom_call.1} parent=11 // pred_region
          _
        $region24: #{tpu_custom_call.1} parent=11 // pred_fallthru
          _
        // Predicated region
        $region25: #{tpu_custom_call.1} parent=11 // pred_check
          %p262 = pneg %p128
        $region26: #{tpu_custom_call.1} parent=11 // pred_check_branch
          %264 = sbr.rel (%p262) target = $region28
        $region27: #{tpu_custom_call.1} parent=11 // pred_region
          _
        $region28: #{tpu_custom_call.1} parent=11 // pred_fallthru
          _
        // Predicated region
        $region29: #{tpu_custom_call.1} parent=11 // pred_check
          %p265 = pneg %p149
        $region30: #{tpu_custom_call.1} parent=11 // pred_check_branch
          %267 = sbr.rel (%p265) target = $region32
        $region31: #{tpu_custom_call.1} parent=11 // pred_region
          _
        $region32: #{tpu_custom_call.1} parent=11 // pred_fallthru
          _
        // Predicated region
        $region33: #{tpu_custom_call.1} parent=11 // pred_check
          %p268 = pneg %p170
        $region34: #{tpu_custom_call.1} parent=11 // pred_check_branch
          %270 = sbr.rel (%p268) target = $region36
        $region35: #{tpu_custom_call.1} parent=11 // pred_region
          _
        $region36: #{tpu_custom_call.1} parent=11 // pred_fallthru
          _
        // Predicated region
        $region37: #{tpu_custom_call.1} parent=11 // pred_check
          %p271 = pneg %p191
        $region38: #{tpu_custom_call.1} parent=11 // pred_check_branch
          %273 = sbr.rel (%p271) target = $region40
        $region39: #{tpu_custom_call.1} parent=11 // pred_region
          _
        $region40: #{tpu_custom_call.1} parent=11 // pred_fallthru
          _
        // Predicated region
        $region41: #{tpu_custom_call.1} parent=11 // pred_check
          %p274 = pneg %p212
        $region42: #{tpu_custom_call.1} parent=11 // pred_check_branch
          %276 = sbr.rel (%p274) target = $region44
        $region43: #{tpu_custom_call.1} parent=11 // pred_region
          _
        $region44: #{tpu_custom_call.1} parent=11 // pred_fallthru
          _
      $region12: #{tpu_custom_call.1} parent=5 // pred_fallthru
        _
      %p277 = scmp.lt.s32.totalorder %s18, 2
      // Predicated region
      $region45: #{tpu_custom_call.1} parent=5 // pred_check
        %p278 = pneg %p277
      $region46: #{tpu_custom_call.1} parent=5 // pred_check_branch
        %280 = sbr.rel (%p278) target = $region48
      $region47: #{tpu_custom_call.1} parent=5 // pred_region
        // Predicated region
        $region49: #{tpu_custom_call.1} parent=47 // pred_check
          %p281 = pneg %p38
        $region50: #{tpu_custom_call.1} parent=47 // pred_check_branch
          %283 = sbr.rel (%p281) target = $region52
        $region51: #{tpu_custom_call.1} parent=47 // pred_region
          %p284 = scmp.lt.s32.totalorder %s18, 1
          %s285 = scalar_select %p284, %s18, 1
          %s286 = smul.addr %s285, 2
          %s287 = smul.addr %s286, 4
          %s288 = scalar_lea.vmem %s0, %s287
        $region52: #{tpu_custom_call.1} parent=47 // pred_fallthru
          _
      $region48: #{tpu_custom_call.1} parent=5 // pred_fallthru
        _
      %p289 = scmp.le.s32.totalorder 1, %s18
      %p290 = scmp.lt.s32.totalorder %s18, 3
      %p291 = pnand %p289, %p290
      %p292 = pneg %p291
      // Predicated region
      $region53: #{tpu_custom_call.1} parent=5 // pred_check
        _
      $region54: #{tpu_custom_call.1} parent=5 // pred_check_branch
        %294 = sbr.rel (%p291) target = $region56
      $region55: #{tpu_custom_call.1} parent=5 // pred_region
        %s295 = ssub.s32 %s18, 1
        %p296 = scmp.lt.s32.totalorder %s23, 1
        %s297 = scalar_select %p296, %s23, 1
        %s298 = smul.addr %s297, 2
        %s299 = smul.addr %s298, 4
        %s300 = scalar_lea.vmem %s0, %s299
        %p301 = pneg %p44
        %p302 = pneg %p41
        %p303 = pneg %p65
        %p304 = pneg %p62
        %p305 = pneg %p86
        %p306 = pneg %p83
        %p307 = pneg %p107
        %p308 = pneg %p104
        %p309 = pneg %p128
        %p310 = pneg %p125
        %p311 = pneg %p149
        %p312 = pneg %p146
        %p313 = pneg %p170
        %p314 = pneg %p167
        %p315 = pneg %p191
        %p316 = pneg %p188
        %p317 = pneg %p212
        %p318 = pneg %p209
        %p319 = pneg %p238
        %p320 = pneg %p235
        %s321 = sand.u32 %s225, 1
        %s322 = scalar_lea.sflag [#allocation3], %s321
        %s323 = sand.u32 %s225, 1
        %s324 = scalar_lea.vmem [#allocation2], %s323
        %p325 = scmp.lt.s32.totalorder %s23, 1
        %s326 = scalar_select %p325, %s23, 1
        %s327 = smul.addr %s326, 2
        %s328 = smul.addr %s327, 4
        %s329 = scalar_lea.vmem %s0, %s328
        %v331 = vld [vmem:[%s329] sm:$0xf]
        %v332 = vld [vmem:[%s329 + $0x4] sm:$0xf]
        %v333 = vld [vmem:[%s7] sm:$0xf]
        %v334 = vld [vmem:[%s7 + $0x4] sm:$0xf]
        %v335 = vld [vmem:[%s7 + $0x8] sm:$0xf]
        %v336 = vld [vmem:[%s7 + $0xc] sm:$0xf]
        %v337 = vld [vmem:[%s7 + $0x10] sm:$0xf]
        %v338 = vld [vmem:[%s7 + $0x14] sm:$0xf]
        %v339 = vld [vmem:[%s7 + $0x18] sm:$0xf]
        %v340 = vld [vmem:[%s7 + $0x1c] sm:$0xf]
        %v341 = vld [vmem:[%s7 + $0x20] sm:$0xf]
        %v342 = vld [vmem:[%s7 + $0x24] sm:$0xf]
        %v343 = vld [vmem:[%s7 + $0x28] sm:$0xf]
        %v344 = vld [vmem:[%s7 + $0x2c] sm:$0xf]
        %v345 = vld [vmem:[%s7 + $0x30] sm:$0xf]
        %v346 = vld [vmem:[%s7 + $0x34] sm:$0xf]
        %v347 = vld [vmem:[%s7 + $0x38] sm:$0xf]
        %v348 = vld [vmem:[%s7 + $0x3c] sm:$0xf]
        %v349 = vld [vmem:[%s7 + $0x40] sm:$0xf]
        %v350 = vld [vmem:[%s7 + $0x44] sm:$0xf]
        %v351 = vld [vmem:[%s7 + $0x48] sm:$0xf]
        %v352 = vld [vmem:[%s7 + $0x4c] sm:$0xf]
        %v353 = vld [vmem:[%s7 + $0x50] sm:$0xf]
        %v354 = vld [vmem:[%s7 + $0x54] sm:$0xf]
        %v355 = vld [vmem:[%s7 + $0x58] sm:$0xf]
        %v356 = vld [vmem:[%s7 + $0x5c] sm:$0xf]
        %v357 = vld [vmem:[%s8] sm:$0x1]
        %v360 = vunpack.c.l.b16 %v331
        %v361 = vunpack.c.l.b16 %v332
        %v362 = vpack.c.b16 %v361, %v360
        %v364 = vshrl.u32 %v362, 16
        %v366 = vshll.u32 %v362, 16
        %v368 = vrot.slane %v366, 1
        %v369 = vor.u32 %v364, %v368
        %370 = vrot.lane.b32.xlu0 %v369, 64
        %v371 = vpop.permute.xlu0 %370
        %v372 = vrot.slane %v362, 1
        %vm373 = vcmask 523264
        %v375 = vsel %vm373, %v362, %v371
        %v377 = vld [vmem:[%s1] sm:$0xf]
        %v378 = vld [vmem:[%s1 + $0x4] sm:$0xf]
        %v379 = vld [vmem:[%s1 + $0x8] sm:$0xf]
        %v380 = vld [vmem:[%s1 + $0xc] sm:$0xf]
        %v381 = vld [vmem:[%s1 + $0x10] sm:$0xf]
        %v382 = vld [vmem:[%s1 + $0x14] sm:$0xf]
        %v383 = vld [vmem:[%s1 + $0x18] sm:$0xf]
        %v384 = vld [vmem:[%s1 + $0x1c] sm:$0xf]
        %v385 = vld [vmem:[%s1 + $0x20] sm:$0xf]
        %v386 = vld [vmem:[%s1 + $0x24] sm:$0xf]
        %v387 = vld [vmem:[%s1 + $0x28] sm:$0xf]
        %v388 = vld [vmem:[%s1 + $0x2c] sm:$0xf]
        %v389 = vld [vmem:[%s1 + $0x30] sm:$0xf]
        %v390 = vld [vmem:[%s1 + $0x34] sm:$0xf]
        %v391 = vld [vmem:[%s1 + $0x38] sm:$0xf]
        %v392 = vld [vmem:[%s1 + $0x3c] sm:$0xf]
        %v393 = vld [vmem:[%s1 + $0x40] sm:$0xf]
        %v394 = vld [vmem:[%s1 + $0x44] sm:$0xf]
        %v395 = vld [vmem:[%s1 + $0x48] sm:$0xf]
        %v396 = vld [vmem:[%s1 + $0x4c] sm:$0xf]
        %v397 = vld [vmem:[%s1 + $0x50] sm:$0xf]
        %v398 = vld [vmem:[%s1 + $0x54] sm:$0xf]
        %v399 = vld [vmem:[%s1 + $0x58] sm:$0xf]
        %v400 = vld [vmem:[%s1 + $0x5c] sm:$0xf]
        %v401 = vld [vmem:[%s2] sm:$0x1]
        %v403 = vperm.slane %v401, 0
        %v429 = vunpack.c.l.b16 %v377
        %v430 = vunpack.c.l.b16 %v378
        %v431 = vunpack.c.l.b16 %v379
        %v432 = vunpack.c.l.b16 %v380
        %v433 = vunpack.c.l.b16 %v381
        %v434 = vunpack.c.l.b16 %v382
        %v435 = vunpack.c.l.b16 %v383
        %v436 = vunpack.c.l.b16 %v384
        %v437 = vunpack.c.l.b16 %v385
        %v438 = vunpack.c.l.b16 %v386
        %v439 = vunpack.c.l.b16 %v387
        %v440 = vunpack.c.l.b16 %v388
        %v441 = vunpack.c.l.b16 %v389
        %v442 = vunpack.c.l.b16 %v390
        %v443 = vunpack.c.l.b16 %v391
        %v444 = vunpack.c.l.b16 %v392
        %v445 = vunpack.c.l.b16 %v393
        %v446 = vunpack.c.l.b16 %v394
        %v447 = vunpack.c.l.b16 %v395
        %v448 = vunpack.c.l.b16 %v396
        %v449 = vunpack.c.l.b16 %v397
        %v450 = vunpack.c.l.b16 %v398
        %v451 = vunpack.c.l.b16 %v399
        %v452 = vunpack.c.l.b16 %v400
        %v453 = vpack.c.b16 %v430, %v429
        %v454 = vpack.c.b16 %v432, %v431
        %v455 = vpack.c.b16 %v434, %v433
        %v456 = vpack.c.b16 %v436, %v435
        %v457 = vpack.c.b16 %v438, %v437
        %v458 = vpack.c.b16 %v440, %v439
        %v459 = vpack.c.b16 %v442, %v441
        %v460 = vpack.c.b16 %v444, %v443
        %v461 = vpack.c.b16 %v446, %v445
        %v462 = vpack.c.b16 %v448, %v447
        %v463 = vpack.c.b16 %v450, %v449
        %v464 = vpack.c.b16 %v452, %v451
        %v478 = vsel %vm373, %v372, 0
        %480 = vmatpush.bf16.msra.mxu0 %v460
        %481 = vmatpush.bf16.msra.mxu0 %v459
        %482 = vmatpush.bf16.msra.mxu0 %v458
        %483 = vmatpush.bf16.msra.mxu0 %v457
        %484 = vmatpush.bf16.msra.mxu0 %v456
        %485 = vmatpush.bf16.msra.mxu0 %v455
        %486 = vmatpush.bf16.msra.mxu0 %v454
        %487 = vmatpush.bf16.msra.mxu0 %v453
        %488 = vmatmul.bf16.gmra.mxu0 %v375
        %v489 = vpop.f32.mrf.mxu0
        %v490 = vadd.f32 %v403, %v489
        %v491 = vpop.f32.mrf.mxu0
        %v492 = vadd.f32 %v403, %v491
        %493 = vdwg.mxu0
        %494 = vmatpush.bf16.msra.mxu0 0
        %495 = vmatpush.bf16.msra.mxu0 0
        %496 = vmatpush.bf16.msra.mxu0 0
        %497 = vmatpush.bf16.msra.mxu0 0
        %498 = vmatpush.bf16.msra.mxu0 %v464
        %499 = vmatpush.bf16.msra.mxu0 %v463
        %500 = vmatpush.bf16.msra.mxu0 %v462
        %501 = vmatpush.bf16.msra.mxu0 %v461
        %502 = vmatmul.bf16.gmra.mxu0 %v478
        %v503 = vpop.f32.mrf.mxu0
        %v504 = vadd.f32 %v490, %v503
        %v505 = vpop.f32.mrf.mxu0
        %v506 = vadd.f32 %v492, %v505
        %507 = vdwg.mxu0
        %v508 = vmax.f32 %v504, 0.0
        %v509 = vmax.f32 %v506, 0.0
        %v510 = vsel %vm373, %v508, -inf
        %vm511 = vcmask 521216
        %v512 = vsel %vm511, %v509, -inf
        %v513 = vmax.f32 %v510, %v512
        %v514 = vrot.slane %v513, 4
        %v515 = vmax.f32 %v513, %v514
        %v516 = vrot.slane %v515, 2
        %v517 = vmax.f32 %v515, %v516
        %v518 = vrot.slane %v517, 1
        %v519 = vmax.f32 %v517, %v518
        %v520 = vpack.c.bf16 %v519, %v519
        %v529 = vunpack.c.l.b16 %v333
        %v530 = vunpack.c.l.b16 %v334
        %v531 = vunpack.c.l.b16 %v335
        %v532 = vunpack.c.l.b16 %v336
        %v533 = vunpack.c.l.b16 %v337
        %v534 = vunpack.c.l.b16 %v338
        %v535 = vunpack.c.l.b16 %v339
        %v536 = vunpack.c.l.b16 %v340
        %v537 = vpack.c.b16 %v530, %v529
        %v538 = vpack.c.b16 %v532, %v531
        %v539 = vpack.c.b16 %v534, %v533
        %v540 = vpack.c.b16 %v536, %v535
        %v546 = vsel %vm373, %v520, 0
        %548 = vmatpush.bf16.msra.mxu0 0
        %549 = vmatpush.bf16.msra.mxu0 0
        %550 = vmatpush.bf16.msra.mxu0 0
        %551 = vmatpush.bf16.msra.mxu0 0
        %552 = vmatpush.bf16.msra.mxu0 %v540
        %553 = vmatpush.bf16.msra.mxu0 %v539
        %554 = vmatpush.bf16.msra.mxu0 %v538
        %555 = vmatpush.bf16.msra.mxu0 %v537
        %556 = vmatmul.bf16.gmra.mxu0 %v546
        %v557 = vpop.f32.mrf.mxu0
        %v558 = vadd.f32 0.0, %v557
        %v559 = vpop.f32.mrf.mxu0
        %560 = vdwg.mxu0
        %v561 = vadd.f32 %v357, %v558
        %v562 = vrot.slane %v364, 1
        %v563 = vrot.slane %v366, 2
        %v564 = vor.u32 %v562, %v563
        %565 = vrot.lane.b32.xlu0 %v564, 64
        %v566 = vpop.permute.xlu0 %565
        %v568 = vsel %vm373, %v372, %v566
        %v570 = vld [vmem:[%s3] sm:$0xf]
        %v571 = vld [vmem:[%s3 + $0x4] sm:$0xf]
        %v572 = vld [vmem:[%s3 + $0x8] sm:$0xf]
        %v573 = vld [vmem:[%s3 + $0xc] sm:$0xf]
        %v574 = vld [vmem:[%s3 + $0x10] sm:$0xf]
        %v575 = vld [vmem:[%s3 + $0x14] sm:$0xf]
        %v576 = vld [vmem:[%s3 + $0x18] sm:$0xf]
        %v577 = vld [vmem:[%s3 + $0x1c] sm:$0xf]
        %v578 = vld [vmem:[%s3 + $0x20] sm:$0xf]
        %v579 = vld [vmem:[%s3 + $0x24] sm:$0xf]
        %v580 = vld [vmem:[%s3 + $0x28] sm:$0xf]
        %v581 = vld [vmem:[%s3 + $0x2c] sm:$0xf]
        %v582 = vld [vmem:[%s3 + $0x30] sm:$0xf]
        %v583 = vld [vmem:[%s3 + $0x34] sm:$0xf]
        %v584 = vld [vmem:[%s3 + $0x38] sm:$0xf]
        %v585 = vld [vmem:[%s3 + $0x3c] sm:$0xf]
        %v586 = vld [vmem:[%s3 + $0x40] sm:$0xf]
        %v587 = vld [vmem:[%s3 + $0x44] sm:$0xf]
        %v588 = vld [vmem:[%s3 + $0x48] sm:$0xf]
        %v589 = vld [vmem:[%s3 + $0x4c] sm:$0xf]
        %v590 = vld [vmem:[%s3 + $0x50] sm:$0xf]
        %v591 = vld [vmem:[%s3 + $0x54] sm:$0xf]
        %v592 = vld [vmem:[%s3 + $0x58] sm:$0xf]
        %v593 = vld [vmem:[%s3 + $0x5c] sm:$0xf]
        %v594 = vld [vmem:[%s3 + $0x60] sm:$0xf]
        %v595 = vld [vmem:[%s3 + $0x64] sm:$0xf]
        %v596 = vld [vmem:[%s3 + $0x68] sm:$0xf]
        %v597 = vld [vmem:[%s3 + $0x6c] sm:$0xf]
        %v598 = vld [vmem:[%s3 + $0x70] sm:$0xf]
        %v599 = vld [vmem:[%s3 + $0x74] sm:$0xf]
        %v600 = vld [vmem:[%s3 + $0x78] sm:$0xf]
        %v601 = vld [vmem:[%s3 + $0x7c] sm:$0xf]
        %v602 = vld [vmem:[%s4] sm:$0x1]
        %v604 = vperm.slane %v602, 0
        %v638 = vunpack.c.l.b16 %v570
        %v639 = vunpack.c.l.b16 %v571
        %v640 = vunpack.c.l.b16 %v572
        %v641 = vunpack.c.l.b16 %v573
        %v642 = vunpack.c.l.b16 %v574
        %v643 = vunpack.c.l.b16 %v575
        %v644 = vunpack.c.l.b16 %v576
        %v645 = vunpack.c.l.b16 %v577
        %v646 = vunpack.c.l.b16 %v578
        %v647 = vunpack.c.l.b16 %v579
        %v648 = vunpack.c.l.b16 %v580
        %v649 = vunpack.c.l.b16 %v581
        %v650 = vunpack.c.l.b16 %v582
        %v651 = vunpack.c.l.b16 %v583
        %v652 = vunpack.c.l.b16 %v584
        %v653 = vunpack.c.l.b16 %v585
        %v654 = vunpack.c.l.b16 %v586
        %v655 = vunpack.c.l.b16 %v587
        %v656 = vunpack.c.l.b16 %v588
        %v657 = vunpack.c.l.b16 %v589
        %v658 = vunpack.c.l.b16 %v590
        %v659 = vunpack.c.l.b16 %v591
        %v660 = vunpack.c.l.b16 %v592
        %v661 = vunpack.c.l.b16 %v593
        %v662 = vunpack.c.l.b16 %v594
        %v663 = vunpack.c.l.b16 %v595
        %v664 = vunpack.c.l.b16 %v596
        %v665 = vunpack.c.l.b16 %v597
        %v666 = vunpack.c.l.b16 %v598
        %v667 = vunpack.c.l.b16 %v599
        %v668 = vunpack.c.l.b16 %v600
        %v669 = vunpack.c.l.b16 %v601
        %v670 = vpack.c.b16 %v639, %v638
        %v671 = vpack.c.b16 %v641, %v640
        %v672 = vpack.c.b16 %v643, %v642
        %v673 = vpack.c.b16 %v645, %v644
        %v674 = vpack.c.b16 %v647, %v646
        %v675 = vpack.c.b16 %v649, %v648
        %v676 = vpack.c.b16 %v651, %v650
        %v677 = vpack.c.b16 %v653, %v652
        %v678 = vpack.c.b16 %v655, %v654
        %v679 = vpack.c.b16 %v657, %v656
        %v680 = vpack.c.b16 %v659, %v658
        %v681 = vpack.c.b16 %v661, %v660
        %v682 = vpack.c.b16 %v663, %v662
        %v683 = vpack.c.b16 %v665, %v664
        %v684 = vpack.c.b16 %v667, %v666
        %v685 = vpack.c.b16 %v669, %v668
        %702 = vmatpush.bf16.msra.mxu0 %v677
        %703 = vmatpush.bf16.msra.mxu0 %v676
        %704 = vmatpush.bf16.msra.mxu0 %v675
        %705 = vmatpush.bf16.msra.mxu0 %v674
        %706 = vmatpush.bf16.msra.mxu0 %v673
        %707 = vmatpush.bf16.msra.mxu0 %v672
        %708 = vmatpush.bf16.msra.mxu0 %v671
        %709 = vmatpush.bf16.msra.mxu0 %v670
        %710 = vmatmul.bf16.gmra.mxu0 %v375
        %v711 = vpop.f32.mrf.mxu0
        %v712 = vadd.f32 %v604, %v711
        %v713 = vpop.f32.mrf.mxu0
        %v714 = vadd.f32 %v604, %v713
        %715 = vdwg.mxu0
        %716 = vmatpush.bf16.msra.mxu0 %v685
        %717 = vmatpush.bf16.msra.mxu0 %v684
        %718 = vmatpush.bf16.msra.mxu0 %v683
        %719 = vmatpush.bf16.msra.mxu0 %v682
        %720 = vmatpush.bf16.msra.mxu0 %v681
        %721 = vmatpush.bf16.msra.mxu0 %v680
        %722 = vmatpush.bf16.msra.mxu0 %v679
        %723 = vmatpush.bf16.msra.mxu0 %v678
        %724 = vmatmul.bf16.gmra.mxu0 %v568
        %v725 = vpop.f32.mrf.mxu0
        %v726 = vadd.f32 %v712, %v725
        %v727 = vpop.f32.mrf.mxu0
        %v728 = vadd.f32 %v714, %v727
        %729 = vdwg.mxu0
        %v730 = vmax.f32 %v726, 0.0
        %v731 = vmax.f32 %v728, 0.0
        %v732 = vsel %vm373, %v730, -inf
        %vm733 = vcmask 520192
        %v734 = vsel %vm733, %v731, -inf
        %v735 = vmax.f32 %v732, %v734
        %v736 = vrot.slane %v735, 4
        %v737 = vmax.f32 %v735, %v736
        %v738 = vrot.slane %v737, 2
        %v739 = vmax.f32 %v737, %v738
        %v740 = vrot.slane %v739, 1
        %v741 = vmax.f32 %v739, %v740
        %v742 = vpack.c.bf16 %v741, %v741
        %v751 = vunpack.c.l.b16 %v341
        %v752 = vunpack.c.l.b16 %v342
        %v753 = vunpack.c.l.b16 %v343
        %v754 = vunpack.c.l.b16 %v344
        %v755 = vunpack.c.l.b16 %v345
        %v756 = vunpack.c.l.b16 %v346
        %v757 = vunpack.c.l.b16 %v347
        %v758 = vunpack.c.l.b16 %v348
        %v759 = vpack.c.b16 %v752, %v751
        %v760 = vpack.c.b16 %v754, %v753
        %v761 = vpack.c.b16 %v756, %v755
        %v762 = vpack.c.b16 %v758, %v757
        %v768 = vsel %vm373, %v742, 0
        %770 = vmatpush.bf16.msra.mxu0 0
        %771 = vmatpush.bf16.msra.mxu0 0
        %772 = vmatpush.bf16.msra.mxu0 0
        %773 = vmatpush.bf16.msra.mxu0 0
        %774 = vmatpush.bf16.msra.mxu0 %v762
        %775 = vmatpush.bf16.msra.mxu0 %v761
        %776 = vmatpush.bf16.msra.mxu0 %v760
        %777 = vmatpush.bf16.msra.mxu0 %v759
        %778 = vmatmul.bf16.gmra.mxu0 %v768
        %v779 = vpop.f32.mrf.mxu0
        %v780 = vadd.f32 0.0, %v779
        %v781 = vpop.f32.mrf.mxu0
        %782 = vdwg.mxu0
        %v783 = vadd.f32 %v561, %v780
        %v784 = vrot.slane %v362, 2
        %v785 = vld [vmem:[%s5] sm:$0xf]
        %v786 = vld [vmem:[%s5 + $0x4] sm:$0xf]
        %v787 = vld [vmem:[%s5 + $0x8] sm:$0xf]
        %v788 = vld [vmem:[%s5 + $0xc] sm:$0xf]
        %v789 = vld [vmem:[%s5 + $0x10] sm:$0xf]
        %v790 = vld [vmem:[%s5 + $0x14] sm:$0xf]
        %v791 = vld [vmem:[%s5 + $0x18] sm:$0xf]
        %v792 = vld [vmem:[%s5 + $0x1c] sm:$0xf]
        %v793 = vld [vmem:[%s5 + $0x20] sm:$0xf]
        %v794 = vld [vmem:[%s5 + $0x24] sm:$0xf]
        %v795 = vld [vmem:[%s5 + $0x28] sm:$0xf]
        %v796 = vld [vmem:[%s5 + $0x2c] sm:$0xf]
        %v797 = vld [vmem:[%s5 + $0x30] sm:$0xf]
        %v798 = vld [vmem:[%s5 + $0x34] sm:$0xf]
        %v799 = vld [vmem:[%s5 + $0x38] sm:$0xf]
        %v800 = vld [vmem:[%s5 + $0x3c] sm:$0xf]
        %v801 = vld [vmem:[%s5 + $0x40] sm:$0xf]
        %v802 = vld [vmem:[%s5 + $0x44] sm:$0xf]
        %v803 = vld [vmem:[%s5 + $0x48] sm:$0xf]
        %v804 = vld [vmem:[%s5 + $0x4c] sm:$0xf]
        %v805 = vld [vmem:[%s5 + $0x50] sm:$0xf]
        %v806 = vld [vmem:[%s5 + $0x54] sm:$0xf]
        %v807 = vld [vmem:[%s5 + $0x58] sm:$0xf]
        %v808 = vld [vmem:[%s5 + $0x5c] sm:$0xf]
        %v809 = vld [vmem:[%s5 + $0x60] sm:$0xf]
        %v810 = vld [vmem:[%s5 + $0x64] sm:$0xf]
        %v811 = vld [vmem:[%s5 + $0x68] sm:$0xf]
        %v812 = vld [vmem:[%s5 + $0x6c] sm:$0xf]
        %v813 = vld [vmem:[%s5 + $0x70] sm:$0xf]
        %v814 = vld [vmem:[%s5 + $0x74] sm:$0xf]
        %v815 = vld [vmem:[%s5 + $0x78] sm:$0xf]
        %v816 = vld [vmem:[%s5 + $0x7c] sm:$0xf]
        %v817 = vld [vmem:[%s5 + $0x80] sm:$0xf]
        %v818 = vld [vmem:[%s5 + $0x84] sm:$0xf]
        %v819 = vld [vmem:[%s5 + $0x88] sm:$0xf]
        %v820 = vld [vmem:[%s5 + $0x8c] sm:$0xf]
        %v821 = vld [vmem:[%s5 + $0x90] sm:$0xf]
        %v822 = vld [vmem:[%s5 + $0x94] sm:$0xf]
        %v823 = vld [vmem:[%s5 + $0x98] sm:$0xf]
        %v824 = vld [vmem:[%s5 + $0x9c] sm:$0xf]
        %v825 = vld [vmem:[%s6] sm:$0x1]
        %v827 = vperm.slane %v825, 0
        %v869 = vunpack.c.l.b16 %v785
        %v870 = vunpack.c.l.b16 %v786
        %v871 = vunpack.c.l.b16 %v787
        %v872 = vunpack.c.l.b16 %v788
        %v873 = vunpack.c.l.b16 %v789
        %v874 = vunpack.c.l.b16 %v790
        %v875 = vunpack.c.l.b16 %v791
        %v876 = vunpack.c.l.b16 %v792
        %v877 = vunpack.c.l.b16 %v793
        %v878 = vunpack.c.l.b16 %v794
        %v879 = vunpack.c.l.b16 %v795
        %v880 = vunpack.c.l.b16 %v796
        %v881 = vunpack.c.l.b16 %v797
        %v882 = vunpack.c.l.b16 %v798
        %v883 = vunpack.c.l.b16 %v799
        %v884 = vunpack.c.l.b16 %v800
        %v885 = vunpack.c.l.b16 %v801
        %v886 = vunpack.c.l.b16 %v802
        %v887 = vunpack.c.l.b16 %v803
        %v888 = vunpack.c.l.b16 %v804
        %v889 = vunpack.c.l.b16 %v805
        %v890 = vunpack.c.l.b16 %v806
        %v891 = vunpack.c.l.b16 %v807
        %v892 = vunpack.c.l.b16 %v808
        %v893 = vunpack.c.l.b16 %v809
        %v894 = vunpack.c.l.b16 %v810
        %v895 = vunpack.c.l.b16 %v811
        %v896 = vunpack.c.l.b16 %v812
        %v897 = vunpack.c.l.b16 %v813
        %v898 = vunpack.c.l.b16 %v814
        %v899 = vunpack.c.l.b16 %v815
        %v900 = vunpack.c.l.b16 %v816
        %v901 = vunpack.c.l.b16 %v817
        %v902 = vunpack.c.l.b16 %v818
        %v903 = vunpack.c.l.b16 %v819
        %v904 = vunpack.c.l.b16 %v820
        %v905 = vunpack.c.l.b16 %v821
        %v906 = vunpack.c.l.b16 %v822
        %v907 = vunpack.c.l.b16 %v823
        %v908 = vunpack.c.l.b16 %v824
        %v909 = vpack.c.b16 %v870, %v869
        %v910 = vpack.c.b16 %v872, %v871
        %v911 = vpack.c.b16 %v874, %v873
        %v912 = vpack.c.b16 %v876, %v875
        %v913 = vpack.c.b16 %v878, %v877
        %v914 = vpack.c.b16 %v880, %v879
        %v915 = vpack.c.b16 %v882, %v881
        %v916 = vpack.c.b16 %v884, %v883
        %v917 = vpack.c.b16 %v886, %v885
        %v918 = vpack.c.b16 %v888, %v887
        %v919 = vpack.c.b16 %v890, %v889
        %v920 = vpack.c.b16 %v892, %v891
        %v921 = vpack.c.b16 %v894, %v893
        %v922 = vpack.c.b16 %v896, %v895
        %v923 = vpack.c.b16 %v898, %v897
        %v924 = vpack.c.b16 %v900, %v899
        %v925 = vpack.c.b16 %v902, %v901
        %v926 = vpack.c.b16 %v904, %v903
        %v927 = vpack.c.b16 %v906, %v905
        %v928 = vpack.c.b16 %v908, %v907
        %v950 = vsel %vm373, %v784, 0
        %952 = vmatpush.bf16.msra.mxu0 %v916
        %953 = vmatpush.bf16.msra.mxu0 %v915
        %954 = vmatpush.bf16.msra.mxu0 %v914
        %955 = vmatpush.bf16.msra.mxu0 %v913
        %956 = vmatpush.bf16.msra.mxu0 %v912
        %957 = vmatpush.bf16.msra.mxu0 %v911
        %958 = vmatpush.bf16.msra.mxu0 %v910
        %959 = vmatpush.bf16.msra.mxu0 %v909
        %960 = vmatmul.bf16.gmra.mxu0 %v375
        %v961 = vpop.f32.mrf.mxu0
        %v962 = vadd.f32 %v827, %v961
        %v963 = vpop.f32.mrf.mxu0
        %v964 = vadd.f32 %v827, %v963
        %965 = vdwg.mxu0
        %966 = vmatpush.bf16.msra.mxu0 %v924
        %967 = vmatpush.bf16.msra.mxu0 %v923
        %968 = vmatpush.bf16.msra.mxu0 %v922
        %969 = vmatpush.bf16.msra.mxu0 %v921
        %970 = vmatpush.bf16.msra.mxu0 %v920
        %971 = vmatpush.bf16.msra.mxu0 %v919
        %972 = vmatpush.bf16.msra.mxu0 %v918
        %973 = vmatpush.bf16.msra.mxu0 %v917
        %974 = vmatmul.bf16.gmra.mxu0 %v568
        %v975 = vpop.f32.mrf.mxu0
        %v976 = vadd.f32 %v962, %v975
        %v977 = vpop.f32.mrf.mxu0
        %v978 = vadd.f32 %v964, %v977
        %979 = vdwg.mxu0
        %980 = vmatpush.bf16.msra.mxu0 0
        %981 = vmatpush.bf16.msra.mxu0 0
        %982 = vmatpush.bf16.msra.mxu0 0
        %983 = vmatpush.bf16.msra.mxu0 0
        %984 = vmatpush.bf16.msra.mxu0 %v928
        %985 = vmatpush.bf16.msra.mxu0 %v927
        %986 = vmatpush.bf16.msra.mxu0 %v926
        %987 = vmatpush.bf16.msra.mxu0 %v925
        %988 = vmatmul.bf16.gmra.mxu0 %v950
        %v989 = vpop.f32.mrf.mxu0
        %v990 = vadd.f32 %v976, %v989
        %v991 = vpop.f32.mrf.mxu0
        %v992 = vadd.f32 %v978, %v991
        %993 = vdwg.mxu0
        %v994 = vmax.f32 %v990, 0.0
        %v995 = vmax.f32 %v992, 0.0
        %v996 = vsel %vm373, %v994, -inf
        %vm997 = vcmask 519168
        %v998 = vsel %vm997, %v995, -inf
        %v999 = vmax.f32 %v996, %v998
        %v1000 = vrot.slane %v999, 4
        %v1001 = vmax.f32 %v999, %v1000
        %v1002 = vrot.slane %v1001, 2
        %v1003 = vmax.f32 %v1001, %v1002
        %v1004 = vrot.slane %v1003, 1
        %v1005 = vmax.f32 %v1003, %v1004
        %v1006 = vpack.c.bf16 %v1005, %v1005
        %v1015 = vunpack.c.l.b16 %v349
        %v1016 = vunpack.c.l.b16 %v350
        %v1017 = vunpack.c.l.b16 %v351
        %v1018 = vunpack.c.l.b16 %v352
        %v1019 = vunpack.c.l.b16 %v353
        %v1020 = vunpack.c.l.b16 %v354
        %v1021 = vunpack.c.l.b16 %v355
        %v1022 = vunpack.c.l.b16 %v356
        %v1023 = vpack.c.b16 %v1016, %v1015
        %v1024 = vpack.c.b16 %v1018, %v1017
        %v1025 = vpack.c.b16 %v1020, %v1019
        %v1026 = vpack.c.b16 %v1022, %v1021
        %v1032 = vsel %vm373, %v1006, 0
        %1034 = vmatpush.bf16.msra.mxu0 0
        %1035 = vmatpush.bf16.msra.mxu0 0
        %1036 = vmatpush.bf16.msra.mxu0 0
        %1037 = vmatpush.bf16.msra.mxu0 0
        %1038 = vmatpush.bf16.msra.mxu0 %v1026
        %1039 = vmatpush.bf16.msra.mxu0 %v1025
        %1040 = vmatpush.bf16.msra.mxu0 %v1024
        %1041 = vmatpush.bf16.msra.mxu0 %v1023
        %1042 = vmatmul.bf16.gmra.mxu0 %v1032
        %v1043 = vpop.f32.mrf.mxu0
        %v1044 = vadd.f32 0.0, %v1043
        %v1045 = vpop.f32.mrf.mxu0
        %1046 = vdwg.mxu0
        %v1047 = vadd.f32 %v783, %v1044
        %vm1048 = vcmask 8192
        %v1049 = vsel %vm1048, %v1047, -inf
        %1050 = vmax.xlane.f32.xlu0 %v1049
        %v1051 = vpop.xlane.xlu0 %1050
        %v1052 = vsub.f32 %v1047, %v1051
        %v1053 = vmul.f32 %v1052, 1.442695
        %v1054 = vpow.pop %v1053
        %v1055 = vsel %vm1048, %v1054, 0.0
        %1056 = vadd.xlane.f32.xlu0 %v1055
        %v1057 = vpop.xlane.xlu0 %1056
        %v1058 = vlog2.pop %v1057
        %v1059 = vmul.f32 %v1058, 0.6931472
        %v1060 = vsub.f32 %v1052, %v1059
        %1061 = vst.msk [vmem:[%s324] sm:$0x1] %vm1048, %v1060
        %s1062 = sand.u32 %s225, 1
        %s1063 = scalar_lea.sflag [#allocation3], %s1062
        %s1064 = sand.u32 %s225, 1
        %s1065 = scalar_lea.vmem [#allocation2], %s1064
        // Predicated region
        $region57: #{tpu_custom_call.1} parent=55 // pred_check
          %p1066 = pneg %p235
        $region58: #{tpu_custom_call.1} parent=55 // pred_check_branch
          %1068 = sbr.rel (%p1066) target = $region60
        $region59: #{tpu_custom_call.1} parent=55 // pred_region
          %1070 = vsyncadd %s1063, 0
          %s1071 = scalar_lea.hbm %s9, %s23
          %s1073 = sshll.u32 %s1065, 4
          %s1074 = int_to_ptr.vmem [resolvable:$true] %s1073
          %s1075 = sshll.u32 %s1071, 4
          %s1076 = int_to_ptr.hbm [resolvable:$true] %s1075
          %1078 = dma.vmem_to_hbm [thread:$0]  %s1074, 16, %s1076, %s1063
        $region60: #{tpu_custom_call.1} parent=55 // pred_fallthru
          _
      $region56: #{tpu_custom_call.1} parent=5 // pred_fallthru
        _
      %p1079 = scmp.le.s32.totalorder 2, %s18
      // Predicated region
      $region61: #{tpu_custom_call.1} parent=5 // pred_check
        %p1080 = pneg %p1079
      $region62: #{tpu_custom_call.1} parent=5 // pred_check_branch
        %1082 = sbr.rel (%p1080) target = $region64
      $region63: #{tpu_custom_call.1} parent=5 // pred_region
        %s1083 = ssub.s32 %s18, 2
        // Predicated region
        $region65: #{tpu_custom_call.1} parent=63 // pred_check
          %p1084 = pneg %p241
        $region66: #{tpu_custom_call.1} parent=63 // pred_check_branch
          %1086 = sbr.rel (%p1084) target = $region68
        $region67: #{tpu_custom_call.1} parent=63 // pred_region
          %s1087 = sand.u32 %s226, 1
          %s1088 = scalar_lea.sflag [#allocation3], %s1087
          %s1089 = sand.u32 %s226, 1
          %s1090 = scalar_lea.vmem [#allocation2], %s1089
          %1092 = dma.done %s1088, 16
        $region68: #{tpu_custom_call.1} parent=63 // pred_fallthru
          _
      $region64: #{tpu_custom_call.1} parent=5 // pred_fallthru
        _
    $region6: #{tpu_custom_call.1} parent=1 // loop_footer
      %s22 = sadd.s32 1, %s18
    $region7: #{tpu_custom_call.1} parent=1 // loop_footer_branch
      %17 = sbr.rel target = $region3
    $region8: #{tpu_custom_call.1} parent=1 // loop_exit
      _
    %1093 = vsyncpa [#allocation3], 1
    %s1094 = scalar_lea.sflag [#allocation3], 1
    %1095 = vsyncpa %s1094, 1

</llo_original>
